<compile_context>
chip_gen: v7x
topology: tpu7x:2x2x1
jax: 0.10.0
libtpu: 0.0.40
codegen_flags: <defaults>
</compile_context>

<pallas_src>
import jax
import jax.numpy as jnp
from jax.experimental import pallas as pl
from jax.experimental.pallas import tpu as pltpu


def mdn_kernel(x_ref, w1_ref, b1_ref, w2_ref, b2_ref, w3_ref, b3_ref,
               bmat_ref, expm_ref, mum_ref, addm_ref, out_ref):
    # Matmul operand dtype (float32, or bfloat16 on the optional fast path);
    # accumulation is always float32 via preferred_element_type.
    cdt = w1_ref.dtype

    x = x_ref[...].astype(cdt)

    # fc1 + relu
    h1 = jnp.maximum(
        jnp.dot(x, w1_ref[...], preferred_element_type=jnp.float32) + b1_ref[...],
        0.0)
    # fc2 + relu
    h2 = jnp.maximum(
        jnp.dot(h1.astype(cdt), w2_ref[...], preferred_element_type=jnp.float32) + b2_ref[...],
        0.0)
    # fc3 -- columns are [ mu(OG) | sigma(OG) | pi_centered(OG) | zero-pad ->128 ].
    # The pi columns are already mean-centered per gaussian group (stabilizer
    # folded into w3/b3 on the host), so no extra group-sum matmul is needed here.
    p = jnp.dot(h2.astype(cdt), w3_ref[...], preferred_element_type=jnp.float32) + b3_ref[...]

    expm = expm_ref[...]   # (1, Wp) 1.0 on sigma+pi columns, 0 elsewhere
    mum = mum_ref[...]     # (1, Wp) 1.0 on mu columns
    addm = addm_ref[...]   # (1, Wp) 1.0 on every non-pi column

    # exp only where needed; mu/pad columns see exp(0)=1 (no inf intermediates).
    e = jnp.exp(p * expm)

    # Per-group sums of exp(pi_centered), broadcast back into the pi column
    # positions with a single block-diagonal matmul; +addm makes the
    # denominator exactly 1.0 on all non-pi columns.
    denom = jnp.dot(e, bmat_ref[...], preferred_element_type=jnp.float32) + addm

    # Single full-width (128-lane dense) store: [ mu | exp(sigma) | softmax(pi) | pad ]
    out_ref[...] = jnp.where(mum > 0.0, p, e / denom)


def mdn_forward(x, params, *, output_dim, num_gaussians, tile_b=4096,
                use_bf16_matmul=False):
    """x: (B, input_dim) float32. Returns (mu, sigma, pi), each (B, output_dim, num_gaussians)."""
    w1, b1, w2, b2, w3, b3 = params
    B, in_dim = x.shape
    G = num_gaussians
    OG = output_dim * G
    W = 3 * OG
    Wp = ((W + 127) // 128) * 128            # pad fc3 / output columns to full lanes
    f32 = jnp.float32

    # ---------------- batch tiling ----------------
    nsteps = max(1, -(-B // tile_b))
    if nsteps == 1 and B >= 1024:
        nsteps = 2                           # >=2 grid steps so "parallel" spans both v7x TCs
    TB = -(-B // nsteps)
    TB = ((TB + 7) // 8) * 8                 # sublane-aligned tile
    Bp = ((B + TB - 1) // TB) * TB
    xp = x if Bp == B else jnp.pad(x, ((0, Bp - B), (0, 0)))
    grid = (Bp // TB,)

    # ---------------- host-side constant prep (hoisted out of the kernel) ----------------
    col = jnp.arange(Wp)
    is_pi = (col >= 2 * OG) & (col < W)
    grp = jnp.where(is_pi, (col - 2 * OG) // G, -1)
    # Block-diagonal "same gaussian group" matrix restricted to the pi columns.
    bmat = (is_pi[:, None] & is_pi[None, :]
            & (grp[:, None] == grp[None, :])).astype(f32)          # (Wp, Wp)
    exp_mask = ((col >= OG) & (col < W)).astype(f32)[None, :]      # sigma + pi cols
    mu_mask = (col < OG).astype(f32)[None, :]                      # mu cols
    add_mask = (~is_pi).astype(f32)[None, :]                       # non-pi cols

    # Fold the per-group mean stabilizer into the fc3 pi columns:  z @ (I - A/G)
    gidx = jnp.arange(OG) // G
    A = (gidx[:, None] == gidx[None, :]).astype(f32)               # (OG, OG) block-diag ones
    C = jnp.eye(OG, dtype=f32) - A / G
    w3_t = w3.T.astype(f32)                                        # (128, W)
    w3_pi = w3_t[:, 2 * OG:] @ C
    b3_pi = b3.astype(f32)[2 * OG:] @ C
    pad_cols = Wp - W
    w3_ext = jnp.concatenate(
        [w3_t[:, :2 * OG], w3_pi, jnp.zeros((w3_t.shape[0], pad_cols), f32)], axis=1)
    b3_ext = jnp.concatenate(
        [b3.astype(f32)[:2 * OG], b3_pi, jnp.zeros((pad_cols,), f32)])[None, :]

    # Lane-major weights / 2-D biases.
    cdt = jnp.bfloat16 if use_bf16_matmul else jnp.float32
    w1_t = w1.T.astype(cdt)
    w2_t = w2.T.astype(cdt)
    w3_ext_c = w3_ext.astype(cdt)
    b1_2d = b1.astype(f32)[None, :]
    b2_2d = b2.astype(f32)[None, :]

    moving = pl.BlockSpec((TB, in_dim), lambda i: (i, 0))           # tiles over batch
    resident = lambda arr: pl.BlockSpec(arr.shape, lambda i: (0, 0))  # stays in VMEM

    out = pl.pallas_call(
        mdn_kernel,
        grid=grid,
        in_specs=[
            moving,
            resident(w1_t), resident(b1_2d),
            resident(w2_t), resident(b2_2d),
            resident(w3_ext_c), resident(b3_ext),
            resident(bmat),
            resident(exp_mask), resident(mu_mask), resident(add_mask),
        ],
        out_specs=pl.BlockSpec((TB, Wp), lambda i: (i, 0)),
        out_shape=jax.ShapeDtypeStruct((Bp, Wp), jnp.float32),
        compiler_params=pltpu.CompilerParams(
            dimension_semantics=("parallel",),
            vmem_limit_bytes=32 * 1024 * 1024),
    )(xp, w1_t, b1_2d, w2_t, b2_2d, w3_ext_c, b3_ext, bmat,
      exp_mask, mu_mask, add_mask)

    out = out[:B, :W]
    mu = out[:, :OG].reshape(B, output_dim, G)
    sigma = out[:, OG:2 * OG].reshape(B, output_dim, G)
    pi = out[:, 2 * OG:].reshape(B, output_dim, G)
    return mu, sigma, pi


def init_params(key, input_dim, output_dim, num_gaussians):
    """Deterministic synthetic init mirroring nn.Linear's U(-1/sqrt(fan_in), +1/sqrt(fan_in))."""
    hidden = 128
    out3 = output_dim * num_gaussians * 3
    shapes = [
        ((hidden, input_dim), (hidden,)),   # fc1 (weight is (out, in) like PyTorch)
        ((hidden, hidden), (hidden,)),      # fc2
        ((out3, hidden), (out3,)),          # fc3
    ]
    params = []
    keys = jax.random.split(key, 2 * len(shapes))
    for i, (wshape, bshape) in enumerate(shapes):
        fan_in = wshape[1]
        bound = 1.0 / jnp.sqrt(jnp.float32(fan_in))
        w = jax.random.uniform(keys[2 * i], wshape, jnp.float32, -bound, bound)
        b = jax.random.uniform(keys[2 * i + 1], bshape, jnp.float32, -bound, bound)
        params += [w, b]
    return tuple(params)


def mdn_reference(x, params, *, output_dim, num_gaussians):
    """Pure-JAX reference replicating the PyTorch forward."""
    w1, b1, w2, b2, w3, b3 = params
    h1 = jax.nn.relu(x @ w1.T + b1)
    h2 = jax.nn.relu(h1 @ w2.T + b2)
    p = h2 @ w3.T + b3
    OG = output_dim * num_gaussians
    mu = p[:, :OG].reshape(-1, output_dim, num_gaussians)
    sigma = jnp.exp(p[:, OG:2 * OG]).reshape(-1, output_dim, num_gaussians)
    pi = jax.nn.softmax(p[:, 2 * OG:].reshape(-1, output_dim, num_gaussians), axis=-1)
    return mu, sigma, pi


def _check(x, params, output_dim, num_gaussians, tile_b):
    mu, sigma, pi = mdn_forward(x, params, output_dim=output_dim,
                                num_gaussians=num_gaussians, tile_b=tile_b)
    jax.block_until_ready((mu, sigma, pi))
    mu_r, sigma_r, pi_r = mdn_reference(x, params, output_dim=output_dim,
                                        num_gaussians=num_gaussians)
    assert jnp.allclose(mu, mu_r, atol=1e-5, rtol=1e-5)
    assert jnp.allclose(sigma, sigma_r, atol=1e-5, rtol=1e-5)
    assert jnp.allclose(pi, pi_r, atol=1e-5, rtol=1e-5)
    assert jnp.allclose(jnp.sum(pi, axis=-1), 1.0, atol=1e-5)


if __name__ == "__main__":
    # Small shapes consistent with the module's forward.
    input_dim, output_dim, num_gaussians = 16, 4, 8

    key = jax.random.PRNGKey(0)
    k_x, k_p, k_x2 = jax.random.split(key, 3)
    params = init_params(k_p, input_dim, output_dim, num_gaussians)

    # 1) Small batch (single grid step, padded to one 8-row tile).
    x_small = jax.random.normal(k_x, (2, input_dim), dtype=jnp.float32)
    _check(x_small, params, output_dim, num_gaussians, tile_b=4096)

    # 2) Slightly larger batch exercising the multi-step tiled/padded path
    #    (tile_b=8 -> grid of 3 steps with padding from 20 to 24 rows).
    x_tiled = jax.random.normal(k_x2, (20, input_dim), dtype=jnp.float32)
    _check(x_tiled, params, output_dim, num_gaussians, tile_b=8)

    # 3) Smoke-test the optional bf16 MXU-operand fast path (v6e/v7x lever);
    #    looser numeric expectations, so only sanity-check outputs here.
    mu_b, sigma_b, pi_b = mdn_forward(x_tiled, params, output_dim=output_dim,
                                      num_gaussians=num_gaussians, tile_b=8,
                                      use_bf16_matmul=True)
    jax.block_until_ready((mu_b, sigma_b, pi_b))
    assert bool(jnp.all(jnp.isfinite(mu_b)) & jnp.all(jnp.isfinite(sigma_b))
                & jnp.all(jnp.isfinite(pi_b)))
    assert jnp.allclose(jnp.sum(pi_b, axis=-1), 1.0, atol=5e-3)

    print("KERNEL_OK")
</pallas_src>

<mosaic_0001>
module attributes {stable_mosaic.version = 11 : i64} {
  func.func @mdn_kernel(%arg0: i32, %arg1: memref<8x16xf32, #tpu.memory_space<vmem>>, %arg2: memref<16x128xf32, #tpu.memory_space<vmem>>, %arg3: memref<1x128xf32, #tpu.memory_space<vmem>>, %arg4: memref<128x128xf32, #tpu.memory_space<vmem>>, %arg5: memref<1x128xf32, #tpu.memory_space<vmem>>, %arg6: memref<128x128xf32, #tpu.memory_space<vmem>>, %arg7: memref<1x128xf32, #tpu.memory_space<vmem>>, %arg8: memref<128x128xf32, #tpu.memory_space<vmem>>, %arg9: memref<1x128xf32, #tpu.memory_space<vmem>>, %arg10: memref<1x128xf32, #tpu.memory_space<vmem>>, %arg11: memref<1x128xf32, #tpu.memory_space<vmem>>, %arg12: memref<8x128xf32, #tpu.memory_space<vmem>>) attributes {dimension_semantics = [#tpu.dimension_semantics<parallel>], iteration_bounds = array<i64: 1>, scalar_prefetch = 0 : i64, scratch_operands = 0 : i64, tpu.core_type = #tpu.core_type<tc>, window_params = [{transform_indices = @transform_0, window_bounds = array<i64: 8, 16>}, {pipeline_mode = #tpu.pipeline_mode<synchronous>, transform_indices = @transform_1, window_bounds = array<i64: 16, 128>}, {pipeline_mode = #tpu.pipeline_mode<synchronous>, transform_indices = @transform_2, window_bounds = array<i64: 1, 128>}, {pipeline_mode = #tpu.pipeline_mode<synchronous>, transform_indices = @transform_3, window_bounds = array<i64: 128, 128>}, {pipeline_mode = #tpu.pipeline_mode<synchronous>, transform_indices = @transform_4, window_bounds = array<i64: 1, 128>}, {pipeline_mode = #tpu.pipeline_mode<synchronous>, transform_indices = @transform_5, window_bounds = array<i64: 128, 128>}, {pipeline_mode = #tpu.pipeline_mode<synchronous>, transform_indices = @transform_6, window_bounds = array<i64: 1, 128>}, {pipeline_mode = #tpu.pipeline_mode<synchronous>, transform_indices = @transform_7, window_bounds = array<i64: 128, 128>}, {pipeline_mode = #tpu.pipeline_mode<synchronous>, transform_indices = @transform_8, window_bounds = array<i64: 1, 128>}, {pipeline_mode = #tpu.pipeline_mode<synchronous>, transform_indices = @transform_9, window_bounds = array<i64: 1, 128>}, {pipeline_mode = #tpu.pipeline_mode<synchronous>, transform_indices = @transform_10, window_bounds = array<i64: 1, 128>}, {transform_indices = @transform_11, window_bounds = array<i64: 8, 128>}]} {
    %c0 = arith.constant 0 : index
    %c0_0 = arith.constant 0 : index
    %0 = vector.load %arg1[%c0, %c0_0] : memref<8x16xf32, #tpu.memory_space<vmem>>, vector<8x16xf32>
    %c0_1 = arith.constant 0 : index
    %c0_2 = arith.constant 0 : index
    %1 = vector.load %arg2[%c0_1, %c0_2] : memref<16x128xf32, #tpu.memory_space<vmem>>, vector<16x128xf32>
    %cst = arith.constant dense<0.000000e+00> : vector<8x128xf32>
    %2 = tpu.matmul %0, %1, %cst {dimension_numbers = #tpu.dot_dimension_numbers<[1], [0], [0], [1], [0, 0, 1, 1], [], []>} : vector<8x16xf32>, vector<16x128xf32>, vector<8x128xf32> -> vector<8x128xf32>
    %c0_3 = arith.constant 0 : index
    %c0_4 = arith.constant 0 : index
    %3 = vector.load %arg3[%c0_3, %c0_4] : memref<1x128xf32, #tpu.memory_space<vmem>>, vector<1x128xf32>
    %4 = vector.broadcast %3 : vector<1x128xf32> to vector<8x128xf32>
    %5 = arith.addf %2, %4 : vector<8x128xf32>
    %cst_5 = arith.constant 0.000000e+00 : f32
    %6 = vector.broadcast %cst_5 : f32 to vector<8x128xf32>
    %7 = arith.maximumf %5, %6 : vector<8x128xf32>
    %c0_6 = arith.constant 0 : index
    %c0_7 = arith.constant 0 : index
    %8 = vector.load %arg4[%c0_6, %c0_7] : memref<128x128xf32, #tpu.memory_space<vmem>>, vector<128x128xf32>
    %cst_8 = arith.constant dense<0.000000e+00> : vector<8x128xf32>
    %9 = tpu.matmul %7, %8, %cst_8 {dimension_numbers = #tpu.dot_dimension_numbers<[1], [0], [0], [1], [0, 0, 1, 1], [], []>} : vector<8x128xf32>, vector<128x128xf32>, vector<8x128xf32> -> vector<8x128xf32>
    %c0_9 = arith.constant 0 : index
    %c0_10 = arith.constant 0 : index
    %10 = vector.load %arg5[%c0_9, %c0_10] : memref<1x128xf32, #tpu.memory_space<vmem>>, vector<1x128xf32>
    %11 = vector.broadcast %10 : vector<1x128xf32> to vector<8x128xf32>
    %12 = arith.addf %9, %11 : vector<8x128xf32>
    %cst_11 = arith.constant 0.000000e+00 : f32
    %13 = vector.broadcast %cst_11 : f32 to vector<8x128xf32>
    %14 = arith.maximumf %12, %13 : vector<8x128xf32>
    %c0_12 = arith.constant 0 : index
    %c0_13 = arith.constant 0 : index
    %15 = vector.load %arg6[%c0_12, %c0_13] : memref<128x128xf32, #tpu.memory_space<vmem>>, vector<128x128xf32>
    %cst_14 = arith.constant dense<0.000000e+00> : vector<8x128xf32>
    %16 = tpu.matmul %14, %15, %cst_14 {dimension_numbers = #tpu.dot_dimension_numbers<[1], [0], [0], [1], [0, 0, 1, 1], [], []>} : vector<8x128xf32>, vector<128x128xf32>, vector<8x128xf32> -> vector<8x128xf32>
    %c0_15 = arith.constant 0 : index
    %c0_16 = arith.constant 0 : index
    %17 = vector.load %arg7[%c0_15, %c0_16] : memref<1x128xf32, #tpu.memory_space<vmem>>, vector<1x128xf32>
    %18 = vector.broadcast %17 : vector<1x128xf32> to vector<8x128xf32>
    %19 = arith.addf %16, %18 : vector<8x128xf32>
    %c0_17 = arith.constant 0 : index
    %c0_18 = arith.constant 0 : index
    %20 = vector.load %arg9[%c0_17, %c0_18] : memref<1x128xf32, #tpu.memory_space<vmem>>, vector<1x128xf32>
    %c0_19 = arith.constant 0 : index
    %c0_20 = arith.constant 0 : index
    %21 = vector.load %arg10[%c0_19, %c0_20] : memref<1x128xf32, #tpu.memory_space<vmem>>, vector<1x128xf32>
    %c0_21 = arith.constant 0 : index
    %c0_22 = arith.constant 0 : index
    %22 = vector.load %arg11[%c0_21, %c0_22] : memref<1x128xf32, #tpu.memory_space<vmem>>, vector<1x128xf32>
    %23 = vector.broadcast %20 : vector<1x128xf32> to vector<8x128xf32>
    %24 = arith.mulf %19, %23 : vector<8x128xf32>
    %25 = math.exp %24 : vector<8x128xf32>
    %c0_23 = arith.constant 0 : index
    %c0_24 = arith.constant 0 : index
    %26 = vector.load %arg8[%c0_23, %c0_24] : memref<128x128xf32, #tpu.memory_space<vmem>>, vector<128x128xf32>
    %cst_25 = arith.constant dense<0.000000e+00> : vector<8x128xf32>
    %27 = tpu.matmul %25, %26, %cst_25 {dimension_numbers = #tpu.dot_dimension_numbers<[1], [0], [0], [1], [0, 0, 1, 1], [], []>} : vector<8x128xf32>, vector<128x128xf32>, vector<8x128xf32> -> vector<8x128xf32>
    %28 = vector.broadcast %22 : vector<1x128xf32> to vector<8x128xf32>
    %29 = arith.addf %27, %28 : vector<8x128xf32>
    %cst_26 = arith.constant 0.000000e+00 : f32
    %30 = vector.broadcast %cst_26 : f32 to vector<1x128xf32>
    %31 = arith.cmpf ogt, %21, %30 : vector<1x128xf32>
    %32 = arith.divf %25, %29 : vector<8x128xf32>
    %33 = vector.shape_cast %31 : vector<1x128xi1> to vector<1x128xi1>
    %34 = vector.broadcast %33 : vector<1x128xi1> to vector<8x128xi1>
    %35 = arith.select %34, %19, %32 : vector<8x128xi1>, vector<8x128xf32>
    %c0_27 = arith.constant 0 : index
    %c0_28 = arith.constant 0 : index
    %36 = vector.load %arg12[%c0_27, %c0_28] : memref<8x128xf32, #tpu.memory_space<vmem>>, vector<8x128xf32>
    tpu.vector_store %arg12[%c0_27, %c0_28], %35 {strides = array<i32>} : memref<8x128xf32, #tpu.memory_space<vmem>>, vector<8x128xf32>,
    return
  }
  func.func @transform_0(%arg0: i32) -> (i32, i32) {
    %c0_i32 = arith.constant 0 : i32
    %c0_i32_0 = arith.constant 0 : i32
    return %arg0, %c0_i32 : i32, i32
  }
  func.func @transform_1(%arg0: i32) -> (i32, i32) {
    %c0_i32 = arith.constant 0 : i32
    %c0_i32_0 = arith.constant 0 : i32
    %c0_i32_1 = arith.constant 0 : i32
    return %c0_i32, %c0_i32_0 : i32, i32
  }
  func.func @transform_2(%arg0: i32) -> (i32, i32) {
    %c0_i32 = arith.constant 0 : i32
    %c0_i32_0 = arith.constant 0 : i32
    %c0_i32_1 = arith.constant 0 : i32
    return %c0_i32, %c0_i32_0 : i32, i32
  }
  func.func @transform_3(%arg0: i32) -> (i32, i32) {
    %c0_i32 = arith.constant 0 : i32
    %c0_i32_0 = arith.constant 0 : i32
    %c0_i32_1 = arith.constant 0 : i32
    return %c0_i32, %c0_i32_0 : i32, i32
  }
  func.func @transform_4(%arg0: i32) -> (i32, i32) {
    %c0_i32 = arith.constant 0 : i32
    %c0_i32_0 = arith.constant 0 : i32
    %c0_i32_1 = arith.constant 0 : i32
    return %c0_i32, %c0_i32_0 : i32, i32
  }
  func.func @transform_5(%arg0: i32) -> (i32, i32) {
    %c0_i32 = arith.constant 0 : i32
    %c0_i32_0 = arith.constant 0 : i32
    %c0_i32_1 = arith.constant 0 : i32
    return %c0_i32, %c0_i32_0 : i32, i32
  }
  func.func @transform_6(%arg0: i32) -> (i32, i32) {
    %c0_i32 = arith.constant 0 : i32
    %c0_i32_0 = arith.constant 0 : i32
    %c0_i32_1 = arith.constant 0 : i32
    return %c0_i32, %c0_i32_0 : i32, i32
  }
  func.func @transform_7(%arg0: i32) -> (i32, i32) {
    %c0_i32 = arith.constant 0 : i32
    %c0_i32_0 = arith.constant 0 : i32
    %c0_i32_1 = arith.constant 0 : i32
    return %c0_i32, %c0_i32_0 : i32, i32
  }
  func.func @transform_8(%arg0: i32) -> (i32, i32) {
    %c0_i32 = arith.constant 0 : i32
    %c0_i32_0 = arith.constant 0 : i32
    %c0_i32_1 = arith.constant 0 : i32
    return %c0_i32, %c0_i32_0 : i32, i32
  }
  func.func @transform_9(%arg0: i32) -> (i32, i32) {
    %c0_i32 = arith.constant 0 : i32
    %c0_i32_0 = arith.constant 0 : i32
    %c0_i32_1 = arith.constant 0 : i32
    return %c0_i32, %c0_i32_0 : i32, i32
  }
  func.func @transform_10(%arg0: i32) -> (i32, i32) {
    %c0_i32 = arith.constant 0 : i32
    %c0_i32_0 = arith.constant 0 : i32
    %c0_i32_1 = arith.constant 0 : i32
    return %c0_i32, %c0_i32_0 : i32, i32
  }
  func.func @transform_11(%arg0: i32) -> (i32, i32) {
    %c0_i32 = arith.constant 0 : i32
    %c0_i32_0 = arith.constant 0 : i32
    return %arg0, %c0_i32 : i32, i32
  }
}

</mosaic_0001>

<llo_original>
// kernel: tpu_custom_call.1
$region0: #{tpu_custom_call.1}
  #allocation0 [shape = 'u32[]', space=smem, size = 0x4, offset = 0x4, fixed_abs, tag = 'smem constant byte address 0x4 - core index']
  #allocation1 [shape = 'u32[144,128]{1,0:T(1,128)}', space=vmem, size = 0x12000, scoped, tag = 'internal scratch']
  %s0 = inlined_call_operand.hbm [shape: f32[8,16], index: 0, kind: input, shape index: {}]
  %s1 = inlined_call_operand.hbm [shape: f32[16,128], index: 1, kind: input, shape index: {}]
  %s2 = inlined_call_operand.vmem [shape: f32[1,128], index: 2, kind: input, shape index: {}]
  %s3 = inlined_call_operand.hbm [shape: f32[128,128], index: 3, kind: input, shape index: {}]
  %s4 = inlined_call_operand.vmem [shape: f32[1,128], index: 4, kind: input, shape index: {}]
  %s5 = inlined_call_operand.hbm [shape: f32[128,128], index: 5, kind: input, shape index: {}]
  %s6 = inlined_call_operand.vmem [shape: f32[1,128], index: 6, kind: input, shape index: {}]
  %s7 = inlined_call_operand.hbm [shape: f32[128,128], index: 7, kind: input, shape index: {}]
  %s8 = inlined_call_operand.vmem [shape: f32[1,128], index: 8, kind: input, shape index: {}]
  %s9 = inlined_call_operand.vmem [shape: f32[1,128], index: 9, kind: input, shape index: {}]
  %s10 = inlined_call_operand.vmem [shape: f32[1,128], index: 10, kind: input, shape index: {}]
  %s11 = inlined_call_operand.hbm [shape: f32[8,128], index: 11, kind: output, shape index: {}]
  %s12 = sld [smem:[#allocation0]]
  $region74: #{tpu_custom_call.1} parent=0
    _
  %s14 = ssub.s32 1, %s12
  %s15 = scalar_select 0, %s14, %s12
  $region1: #{tpu_custom_call.1} parent=0
    #allocation2 [shape = 'u8[4096]{0}', space=vmem, size = 0x1000, scoped, tag = 'input window, operand 0, single buffered']
    #allocation3 [shape = 's32[1]{0}', space=sflag, size = 0x4, scoped, tag = 'scoped memory for tpu_custom_call.1']
    #allocation4 [shape = 's32[1]{0}', space=sflag, size = 0x4, scoped, tag = 'scoped memory for tpu_custom_call.1']
    #allocation5 [shape = 'u8[8192]{0}', space=vmem, size = 0x2000, scoped, tag = 'input window, operand 1, single buffered']
    #allocation6 [shape = 's32[1]{0}', space=sflag, size = 0x4, scoped, tag = 'scoped memory for tpu_custom_call.1']
    #allocation7 [shape = 'u8[65536]{0}', space=vmem, size = 0x10000, scoped, tag = 'input window, operand 3, single buffered']
    #allocation8 [shape = 'u8[65536]{0}', space=vmem, size = 0x10000, scoped, tag = 'input window, operand 5, single buffered']
    #allocation9 [shape = 's32[1]{0}', space=sflag, size = 0x4, scoped, tag = 'scoped memory for tpu_custom_call.1']
    #allocation10 [shape = 'u8[65536]{0}', space=vmem, size = 0x10000, scoped, tag = 'input window, operand 7, single buffered']
    #allocation11 [shape = 'u8[4096]{0}', space=vmem, size = 0x1000, scoped, tag = 'output window, operand 0, single buffered']
    %16 = vsyncpa [#allocation3], 0
    %17 = vsyncpa [#allocation6], 0
    %18 = vsyncpa [#allocation9], 0
    %19 = vsyncpa [#allocation4], 0
    // Predicated region
    $region2: #{tpu_custom_call.1} parent=1 // pred_check
      _
    $region3: #{tpu_custom_call.1} parent=1 // pred_check_branch
      %21 = sbr.rel (0) target = $region5
    $region4: #{tpu_custom_call.1} parent=1 // pred_region
      %s23 = ssub.s32 128, 128
      %24 = vsyncadd [#allocation3], %s23
      %s26 = sshll.u32 [#allocation2], 4
      %s27 = int_to_ptr.vmem [resolvable:$true] %s26
      %29 = dma.hbm_to_vmem [thread:$0]  %s0, 128, %s27, [#allocation3]
    $region5: #{tpu_custom_call.1} parent=1 // pred_fallthru
      _
    // Predicated region
    $region6: #{tpu_custom_call.1} parent=1 // pred_check
      _
    $region7: #{tpu_custom_call.1} parent=1 // pred_check_branch
      %31 = sbr.rel (0) target = $region9
    $region8: #{tpu_custom_call.1} parent=1 // pred_region
      %s33 = ssub.s32 256, 256
      %34 = vsyncadd [#allocation6], %s33
      %s35 = sshll.u32 [#allocation5], 4
      %s36 = int_to_ptr.vmem [resolvable:$true] %s35
      %41 = dma.hbm_to_vmem [thread:$0]  %s1, 256, %s36, [#allocation6], 128, 128, 8
    $region9: #{tpu_custom_call.1} parent=1 // pred_fallthru
      _
    // Predicated region
    $region10: #{tpu_custom_call.1} parent=1 // pred_check
      _
    $region11: #{tpu_custom_call.1} parent=1 // pred_check_branch
      %43 = sbr.rel (0) target = $region13
    $region12: #{tpu_custom_call.1} parent=1 // pred_region
      _
    $region13: #{tpu_custom_call.1} parent=1 // pred_fallthru
      _
    // Predicated region
    $region14: #{tpu_custom_call.1} parent=1 // pred_check
      _
    $region15: #{tpu_custom_call.1} parent=1 // pred_check_branch
      %45 = sbr.rel (0) target = $region17
    $region16: #{tpu_custom_call.1} parent=1 // pred_region
      %s47 = ssub.s32 2048, 2048
      %48 = vsyncadd [#allocation6], %s47
      %s49 = sshll.u32 [#allocation7], 4
      %s50 = int_to_ptr.vmem [resolvable:$true] %s49
      %55 = dma.hbm_to_vmem [thread:$0]  %s3, 2048, %s50, [#allocation6], 128, 128, 8
    $region17: #{tpu_custom_call.1} parent=1 // pred_fallthru
      _
    // Predicated region
    $region18: #{tpu_custom_call.1} parent=1 // pred_check
      _
    $region19: #{tpu_custom_call.1} parent=1 // pred_check_branch
      %57 = sbr.rel (0) target = $region21
    $region20: #{tpu_custom_call.1} parent=1 // pred_region
      _
    $region21: #{tpu_custom_call.1} parent=1 // pred_fallthru
      _
    // Predicated region
    $region22: #{tpu_custom_call.1} parent=1 // pred_check
      _
    $region23: #{tpu_custom_call.1} parent=1 // pred_check_branch
      %59 = sbr.rel (0) target = $region25
    $region24: #{tpu_custom_call.1} parent=1 // pred_region
      %s61 = ssub.s32 2048, 2048
      %62 = vsyncadd [#allocation9], %s61
      %s63 = sshll.u32 [#allocation8], 4
      %s64 = int_to_ptr.vmem [resolvable:$true] %s63
      %69 = dma.hbm_to_vmem [thread:$0]  %s5, 2048, %s64, [#allocation9], 128, 128, 8
    $region25: #{tpu_custom_call.1} parent=1 // pred_fallthru
      _
    // Predicated region
    $region26: #{tpu_custom_call.1} parent=1 // pred_check
      _
    $region27: #{tpu_custom_call.1} parent=1 // pred_check_branch
      %71 = sbr.rel (0) target = $region29
    $region28: #{tpu_custom_call.1} parent=1 // pred_region
      _
    $region29: #{tpu_custom_call.1} parent=1 // pred_fallthru
      _
    // Predicated region
    $region30: #{tpu_custom_call.1} parent=1 // pred_check
      _
    $region31: #{tpu_custom_call.1} parent=1 // pred_check_branch
      %73 = sbr.rel (0) target = $region33
    $region32: #{tpu_custom_call.1} parent=1 // pred_region
      %s75 = ssub.s32 2048, 2048
      %76 = vsyncadd [#allocation9], %s75
      %s77 = sshll.u32 [#allocation10], 4
      %s78 = int_to_ptr.vmem [resolvable:$true] %s77
      %83 = dma.hbm_to_vmem [thread:$0]  %s7, 2048, %s78, [#allocation9], 128, 128, 8
    $region33: #{tpu_custom_call.1} parent=1 // pred_fallthru
      _
    // Predicated region
    $region34: #{tpu_custom_call.1} parent=1 // pred_check
      _
    $region35: #{tpu_custom_call.1} parent=1 // pred_check_branch
      %85 = sbr.rel (0) target = $region37
    $region36: #{tpu_custom_call.1} parent=1 // pred_region
      _
    $region37: #{tpu_custom_call.1} parent=1 // pred_fallthru
      _
    // Predicated region
    $region38: #{tpu_custom_call.1} parent=1 // pred_check
      _
    $region39: #{tpu_custom_call.1} parent=1 // pred_check_branch
      %87 = sbr.rel (0) target = $region41
    $region40: #{tpu_custom_call.1} parent=1 // pred_region
      _
    $region41: #{tpu_custom_call.1} parent=1 // pred_fallthru
      _
    // Predicated region
    $region42: #{tpu_custom_call.1} parent=1 // pred_check
      _
    $region43: #{tpu_custom_call.1} parent=1 // pred_check_branch
      %89 = sbr.rel (0) target = $region45
    $region44: #{tpu_custom_call.1} parent=1 // pred_region
      _
    $region45: #{tpu_custom_call.1} parent=1 // pred_fallthru
      _
    // Predicated region
    $region46: #{tpu_custom_call.1} parent=1 // pred_check
      _
    $region47: #{tpu_custom_call.1} parent=1 // pred_check_branch
      %91 = sbr.rel (0) target = $region49
    $region48: #{tpu_custom_call.1} parent=1 // pred_region
      %92 = dma.done [#allocation3], 128
    $region49: #{tpu_custom_call.1} parent=1 // pred_fallthru
      _
    // Predicated region
    $region50: #{tpu_custom_call.1} parent=1 // pred_check
      _
    $region51: #{tpu_custom_call.1} parent=1 // pred_check_branch
      %94 = sbr.rel (0) target = $region53
    $region52: #{tpu_custom_call.1} parent=1 // pred_region
      %95 = dma.done [#allocation6], 256
    $region53: #{tpu_custom_call.1} parent=1 // pred_fallthru
      _
    // Predicated region
    $region54: #{tpu_custom_call.1} parent=1 // pred_check
      _
    $region55: #{tpu_custom_call.1} parent=1 // pred_check_branch
      %97 = sbr.rel (0) target = $region57
    $region56: #{tpu_custom_call.1} parent=1 // pred_region
      %98 = dma.done [#allocation6], 2048
    $region57: #{tpu_custom_call.1} parent=1 // pred_fallthru
      _
    // Predicated region
    $region58: #{tpu_custom_call.1} parent=1 // pred_check
      _
    $region59: #{tpu_custom_call.1} parent=1 // pred_check_branch
      %100 = sbr.rel (0) target = $region61
    $region60: #{tpu_custom_call.1} parent=1 // pred_region
      %101 = dma.done [#allocation9], 2048
    $region61: #{tpu_custom_call.1} parent=1 // pred_fallthru
      _
    // Predicated region
    $region62: #{tpu_custom_call.1} parent=1 // pred_check
      _
    $region63: #{tpu_custom_call.1} parent=1 // pred_check_branch
      %103 = sbr.rel (0) target = $region65
    $region64: #{tpu_custom_call.1} parent=1 // pred_region
      %104 = dma.done [#allocation9], 2048
    $region65: #{tpu_custom_call.1} parent=1 // pred_fallthru
      _
    %v105 = vld [vmem:[#allocation2] sm:$0xff]
    %v106 = vld [vmem:[#allocation5] sm:$0xff]
    %v107 = vld [vmem:[#allocation5 + $0x8] sm:$0xff]
    %v108 = vld [vmem:[%s2] sm:$0x1]
    %v110 = vlaneseq
    %v111 = vshrl.u32 %v110, 7
    %v112 = vsub.s32 0, %v111
    %v113 = vrot.slane %v108, %v112
    %vm115 = vcmask 130048
    %v117 = vsel %vm115, %v105, 0
    %119 = vmatprep.subr.mxu0 0.0
    %120 = vmatpush1.msra.mxu0 %v106
    %121 = vmatprep.subr.mxu0 0.0
    %122 = vmatpush1.msra.mxu0 %v107
    %123 = vmatprep.subr.mxu0 0.0
    %124 = vmatpush1.msra.mxu0 0.0
    %125 = vmatprep.subr.mxu0 0.0
    %126 = vmatpush1.msra.mxu0 0.0
    %127 = vmatprep.subr.mxu0 0.0
    %128 = vmatpush1.msra.mxu0 0.0
    %129 = vmatprep.subr.mxu0 0.0
    %130 = vmatpush1.msra.mxu0 0.0
    %131 = vmatprep.subr.mxu0 0.0
    %132 = vmatpush1.msra.mxu0 0.0
    %133 = vmatprep.subr.mxu0 0.0
    %134 = vmatpush1.msra.mxu0 0.0
    %135 = vmatprep.subr.mxu0 0.0
    %136 = vmatpush1.msra.mxu0 0.0
    %137 = vmatprep.subr.mxu0 0.0
    %138 = vmatpush1.msra.mxu0 0.0
    %139 = vmatprep.subr.mxu0 0.0
    %140 = vmatpush1.msra.mxu0 0.0
    %141 = vmatprep.subr.mxu0 0.0
    %142 = vmatpush1.msra.mxu0 0.0
    %143 = vmatprep.subr.mxu0 0.0
    %144 = vmatpush1.msra.mxu0 0.0
    %145 = vmatprep.subr.mxu0 0.0
    %146 = vmatpush1.msra.mxu0 0.0
    %147 = vmatprep.subr.mxu0 0.0
    %148 = vmatpush1.msra.mxu0 0.0
    %149 = vmatprep.subr.mxu0 0.0
    %150 = vmatpush1.msra.mxu0 0.0
    %151 = vmatprep.subr.mxu0 0.0
    %152 = vmatpush1.msra.mxu0 0.0
    %153 = vmatprep.subr.mxu0 0.0
    %154 = vmatpush1.msra.mxu0 0.0
    %155 = vmatprep.subr.mxu0 0.0
    %156 = vmatpush1.msra.mxu0 0.0
    %157 = vmatprep.subr.mxu0 0.0
    %158 = vmatpush1.msra.mxu0 0.0
    %159 = vmatprep.subr.mxu0 0.0
    %160 = vmatpush1.msra.mxu0 0.0
    %161 = vmatprep.subr.mxu0 0.0
    %162 = vmatpush1.msra.mxu0 0.0
    %163 = vmatprep.subr.mxu0 0.0
    %164 = vmatpush1.msra.mxu0 0.0
    %165 = vmatprep.subr.mxu0 0.0
    %166 = vmatpush1.msra.mxu0 0.0
    %167 = vmatprep.subr.mxu0 0.0
    %168 = vmatpush1.msra.mxu0 0.0
    %169 = vmatprep.subr.mxu0 0.0
    %170 = vmatpush1.msra.mxu0 0.0
    %171 = vmatprep.subr.mxu0 0.0
    %172 = vmatpush1.msra.mxu0 0.0
    %173 = vmatprep.subr.mxu0 0.0
    %174 = vmatpush1.msra.mxu0 0.0
    %175 = vmatprep.subr.mxu0 0.0
    %176 = vmatpush1.msra.mxu0 0.0
    %177 = vmatprep.subr.mxu0 0.0
    %178 = vmatpush1.msra.mxu0 0.0
    %179 = vmatprep.subr.mxu0 0.0
    %180 = vmatpush1.msra.mxu0 0.0
    %181 = vmatprep.subr.mxu0 0.0
    %182 = vmatpush1.msra.mxu0 0.0
    %183 = vmatprep.mubr.f32.mxu0 0.0
    %184 = vmatmul.mubr.f32.gmra.mrb[0].mxu0 %v117
    %v185 = vpop.f32.mrb[0].mxu0
    %v186 = vadd.f32 %v113, %v185
    %v187 = vpop.f32.mrb[0].mxu0
    %188 = vdwg.mxu0
    %v189 = vmax.f32 %v186, 0.0
    %v190 = vld [vmem:[#allocation7] sm:$0xff]
    %v191 = vld [vmem:[#allocation7 + $0x8] sm:$0xff]
    %v192 = vld [vmem:[#allocation7 + $0x10] sm:$0xff]
    %v193 = vld [vmem:[#allocation7 + $0x18] sm:$0xff]
    %v194 = vld [vmem:[#allocation7 + $0x20] sm:$0xff]
    %v195 = vld [vmem:[#allocation7 + $0x28] sm:$0xff]
    %v196 = vld [vmem:[#allocation7 + $0x30] sm:$0xff]
    %v197 = vld [vmem:[#allocation7 + $0x38] sm:$0xff]
    %v198 = vld [vmem:[#allocation7 + $0x40] sm:$0xff]
    %v199 = vld [vmem:[#allocation7 + $0x48] sm:$0xff]
    %v200 = vld [vmem:[#allocation7 + $0x50] sm:$0xff]
    %v201 = vld [vmem:[#allocation7 + $0x58] sm:$0xff]
    %v202 = vld [vmem:[#allocation7 + $0x60] sm:$0xff]
    %v203 = vld [vmem:[#allocation7 + $0x68] sm:$0xff]
    %v204 = vld [vmem:[#allocation7 + $0x70] sm:$0xff]
    %v205 = vld [vmem:[#allocation7 + $0x78] sm:$0xff]
    %v206 = vld [vmem:[%s4] sm:$0x1]
    %v208 = vlaneseq
    %v209 = vshrl.u32 %v208, 7
    %v210 = vsub.s32 0, %v209
    %v211 = vrot.slane %v206, %v210
    %213 = vmatprep.subr.mxu0 0.0
    %214 = vmatpush1.msra.mxu0 %v190
    %215 = vmatprep.subr.mxu0 0.0
    %216 = vmatpush1.msra.mxu0 %v191
    %217 = vmatprep.subr.mxu0 0.0
    %218 = vmatpush1.msra.mxu0 %v192
    %219 = vmatprep.subr.mxu0 0.0
    %220 = vmatpush1.msra.mxu0 %v193
    %221 = vmatprep.subr.mxu0 0.0
    %222 = vmatpush1.msra.mxu0 %v194
    %223 = vmatprep.subr.mxu0 0.0
    %224 = vmatpush1.msra.mxu0 %v195
    %225 = vmatprep.subr.mxu0 0.0
    %226 = vmatpush1.msra.mxu0 %v196
    %227 = vmatprep.subr.mxu0 0.0
    %228 = vmatpush1.msra.mxu0 %v197
    %229 = vmatprep.subr.mxu0 0.0
    %230 = vmatpush1.msra.mxu0 %v198
    %231 = vmatprep.subr.mxu0 0.0
    %232 = vmatpush1.msra.mxu0 %v199
    %233 = vmatprep.subr.mxu0 0.0
    %234 = vmatpush1.msra.mxu0 %v200
    %235 = vmatprep.subr.mxu0 0.0
    %236 = vmatpush1.msra.mxu0 %v201
    %237 = vmatprep.subr.mxu0 0.0
    %238 = vmatpush1.msra.mxu0 %v202
    %239 = vmatprep.subr.mxu0 0.0
    %240 = vmatpush1.msra.mxu0 %v203
    %241 = vmatprep.subr.mxu0 0.0
    %242 = vmatpush1.msra.mxu0 %v204
    %243 = vmatprep.subr.mxu0 0.0
    %244 = vmatpush1.msra.mxu0 %v205
    %245 = vmatprep.subr.mxu0 0.0
    %246 = vmatpush1.msra.mxu0 0.0
    %247 = vmatprep.subr.mxu0 0.0
    %248 = vmatpush1.msra.mxu0 0.0
    %249 = vmatprep.subr.mxu0 0.0
    %250 = vmatpush1.msra.mxu0 0.0
    %251 = vmatprep.subr.mxu0 0.0
    %252 = vmatpush1.msra.mxu0 0.0
    %253 = vmatprep.subr.mxu0 0.0
    %254 = vmatpush1.msra.mxu0 0.0
    %255 = vmatprep.subr.mxu0 0.0
    %256 = vmatpush1.msra.mxu0 0.0
    %257 = vmatprep.subr.mxu0 0.0
    %258 = vmatpush1.msra.mxu0 0.0
    %259 = vmatprep.subr.mxu0 0.0
    %260 = vmatpush1.msra.mxu0 0.0
    %261 = vmatprep.subr.mxu0 0.0
    %262 = vmatpush1.msra.mxu0 0.0
    %263 = vmatprep.subr.mxu0 0.0
    %264 = vmatpush1.msra.mxu0 0.0
    %265 = vmatprep.subr.mxu0 0.0
    %266 = vmatpush1.msra.mxu0 0.0
    %267 = vmatprep.subr.mxu0 0.0
    %268 = vmatpush1.msra.mxu0 0.0
    %269 = vmatprep.subr.mxu0 0.0
    %270 = vmatpush1.msra.mxu0 0.0
    %271 = vmatprep.subr.mxu0 0.0
    %272 = vmatpush1.msra.mxu0 0.0
    %273 = vmatprep.subr.mxu0 0.0
    %274 = vmatpush1.msra.mxu0 0.0
    %275 = vmatprep.subr.mxu0 0.0
    %276 = vmatpush1.msra.mxu0 0.0
    %277 = vmatprep.mubr.f32.mxu0 0.0
    %278 = vmatmul.mubr.f32.gmra.mrb[0].mxu0 %v189
    %v279 = vpop.f32.mrb[0].mxu0
    %v280 = vadd.f32 %v211, %v279
    %v281 = vpop.f32.mrb[0].mxu0
    %282 = vdwg.mxu0
    %v283 = vmax.f32 %v280, 0.0
    %v284 = vld [vmem:[#allocation8] sm:$0xff]
    %v285 = vld [vmem:[#allocation8 + $0x8] sm:$0xff]
    %v286 = vld [vmem:[#allocation8 + $0x10] sm:$0xff]
    %v287 = vld [vmem:[#allocation8 + $0x18] sm:$0xff]
    %v288 = vld [vmem:[#allocation8 + $0x20] sm:$0xff]
    %v289 = vld [vmem:[#allocation8 + $0x28] sm:$0xff]
    %v290 = vld [vmem:[#allocation8 + $0x30] sm:$0xff]
    %v291 = vld [vmem:[#allocation8 + $0x38] sm:$0xff]
    %v292 = vld [vmem:[#allocation8 + $0x40] sm:$0xff]
    %v293 = vld [vmem:[#allocation8 + $0x48] sm:$0xff]
    %v294 = vld [vmem:[#allocation8 + $0x50] sm:$0xff]
    %v295 = vld [vmem:[#allocation8 + $0x58] sm:$0xff]
    %v296 = vld [vmem:[#allocation8 + $0x60] sm:$0xff]
    %v297 = vld [vmem:[#allocation8 + $0x68] sm:$0xff]
    %v298 = vld [vmem:[#allocation8 + $0x70] sm:$0xff]
    %v299 = vld [vmem:[#allocation8 + $0x78] sm:$0xff]
    %v300 = vld [vmem:[%s6] sm:$0x1]
    %v302 = vlaneseq
    %v303 = vshrl.u32 %v302, 7
    %v304 = vsub.s32 0, %v303
    %v305 = vrot.slane %v300, %v304
    %307 = vmatprep.subr.mxu0 0.0
    %308 = vmatpush1.msra.mxu0 %v284
    %309 = vmatprep.subr.mxu0 0.0
    %310 = vmatpush1.msra.mxu0 %v285
    %311 = vmatprep.subr.mxu0 0.0
    %312 = vmatpush1.msra.mxu0 %v286
    %313 = vmatprep.subr.mxu0 0.0
    %314 = vmatpush1.msra.mxu0 %v287
    %315 = vmatprep.subr.mxu0 0.0
    %316 = vmatpush1.msra.mxu0 %v288
    %317 = vmatprep.subr.mxu0 0.0
    %318 = vmatpush1.msra.mxu0 %v289
    %319 = vmatprep.subr.mxu0 0.0
    %320 = vmatpush1.msra.mxu0 %v290
    %321 = vmatprep.subr.mxu0 0.0
    %322 = vmatpush1.msra.mxu0 %v291
    %323 = vmatprep.subr.mxu0 0.0
    %324 = vmatpush1.msra.mxu0 %v292
    %325 = vmatprep.subr.mxu0 0.0
    %326 = vmatpush1.msra.mxu0 %v293
    %327 = vmatprep.subr.mxu0 0.0
    %328 = vmatpush1.msra.mxu0 %v294
    %329 = vmatprep.subr.mxu0 0.0
    %330 = vmatpush1.msra.mxu0 %v295
    %331 = vmatprep.subr.mxu0 0.0
    %332 = vmatpush1.msra.mxu0 %v296
    %333 = vmatprep.subr.mxu0 0.0
    %334 = vmatpush1.msra.mxu0 %v297
    %335 = vmatprep.subr.mxu0 0.0
    %336 = vmatpush1.msra.mxu0 %v298
    %337 = vmatprep.subr.mxu0 0.0
    %338 = vmatpush1.msra.mxu0 %v299
    %339 = vmatprep.subr.mxu0 0.0
    %340 = vmatpush1.msra.mxu0 0.0
    %341 = vmatprep.subr.mxu0 0.0
    %342 = vmatpush1.msra.mxu0 0.0
    %343 = vmatprep.subr.mxu0 0.0
    %344 = vmatpush1.msra.mxu0 0.0
    %345 = vmatprep.subr.mxu0 0.0
    %346 = vmatpush1.msra.mxu0 0.0
    %347 = vmatprep.subr.mxu0 0.0
    %348 = vmatpush1.msra.mxu0 0.0
    %349 = vmatprep.subr.mxu0 0.0
    %350 = vmatpush1.msra.mxu0 0.0
    %351 = vmatprep.subr.mxu0 0.0
    %352 = vmatpush1.msra.mxu0 0.0
    %353 = vmatprep.subr.mxu0 0.0
    %354 = vmatpush1.msra.mxu0 0.0
    %355 = vmatprep.subr.mxu0 0.0
    %356 = vmatpush1.msra.mxu0 0.0
    %357 = vmatprep.subr.mxu0 0.0
    %358 = vmatpush1.msra.mxu0 0.0
    %359 = vmatprep.subr.mxu0 0.0
    %360 = vmatpush1.msra.mxu0 0.0
    %361 = vmatprep.subr.mxu0 0.0
    %362 = vmatpush1.msra.mxu0 0.0
    %363 = vmatprep.subr.mxu0 0.0
    %364 = vmatpush1.msra.mxu0 0.0
    %365 = vmatprep.subr.mxu0 0.0
    %366 = vmatpush1.msra.mxu0 0.0
    %367 = vmatprep.subr.mxu0 0.0
    %368 = vmatpush1.msra.mxu0 0.0
    %369 = vmatprep.subr.mxu0 0.0
    %370 = vmatpush1.msra.mxu0 0.0
    %371 = vmatprep.mubr.f32.mxu0 0.0
    %372 = vmatmul.mubr.f32.gmra.mrb[0].mxu0 %v283
    %v373 = vpop.f32.mrb[0].mxu0
    %v374 = vadd.f32 %v305, %v373
    %v375 = vpop.f32.mrb[0].mxu0
    %376 = vdwg.mxu0
    %v377 = vld [vmem:[%s8] sm:$0x1]
    %v378 = vld [vmem:[%s9] sm:$0x1]
    %v379 = vld [vmem:[%s10] sm:$0x1]
    %v381 = vlaneseq
    %v382 = vshrl.u32 %v381, 7
    %v383 = vsub.s32 0, %v382
    %v384 = vrot.slane %v377, %v383
    %v386 = vmul.f32 %v374, %v384
    %v387 = vmul.f32 %v386, 1.442695
    %v388 = vpow.pop %v387
    %v389 = vld [vmem:[#allocation10] sm:$0xff]
    %v390 = vld [vmem:[#allocation10 + $0x8] sm:$0xff]
    %v391 = vld [vmem:[#allocation10 + $0x10] sm:$0xff]
    %v392 = vld [vmem:[#allocation10 + $0x18] sm:$0xff]
    %v393 = vld [vmem:[#allocation10 + $0x20] sm:$0xff]
    %v394 = vld [vmem:[#allocation10 + $0x28] sm:$0xff]
    %v395 = vld [vmem:[#allocation10 + $0x30] sm:$0xff]
    %v396 = vld [vmem:[#allocation10 + $0x38] sm:$0xff]
    %v397 = vld [vmem:[#allocation10 + $0x40] sm:$0xff]
    %v398 = vld [vmem:[#allocation10 + $0x48] sm:$0xff]
    %v399 = vld [vmem:[#allocation10 + $0x50] sm:$0xff]
    %v400 = vld [vmem:[#allocation10 + $0x58] sm:$0xff]
    %v401 = vld [vmem:[#allocation10 + $0x60] sm:$0xff]
    %v402 = vld [vmem:[#allocation10 + $0x68] sm:$0xff]
    %v403 = vld [vmem:[#allocation10 + $0x70] sm:$0xff]
    %v404 = vld [vmem:[#allocation10 + $0x78] sm:$0xff]
    %v406 = vlaneseq
    %v407 = vshrl.u32 %v406, 7
    %v408 = vsub.s32 0, %v407
    %v409 = vrot.slane %v379, %v408
    %411 = vmatprep.subr.mxu0 0.0
    %412 = vmatpush1.msra.mxu0 %v389
    %413 = vmatprep.subr.mxu0 0.0
    %414 = vmatpush1.msra.mxu0 %v390
    %415 = vmatprep.subr.mxu0 0.0
    %416 = vmatpush1.msra.mxu0 %v391
    %417 = vmatprep.subr.mxu0 0.0
    %418 = vmatpush1.msra.mxu0 %v392
    %419 = vmatprep.subr.mxu0 0.0
    %420 = vmatpush1.msra.mxu0 %v393
    %421 = vmatprep.subr.mxu0 0.0
    %422 = vmatpush1.msra.mxu0 %v394
    %423 = vmatprep.subr.mxu0 0.0
    %424 = vmatpush1.msra.mxu0 %v395
    %425 = vmatprep.subr.mxu0 0.0
    %426 = vmatpush1.msra.mxu0 %v396
    %427 = vmatprep.subr.mxu0 0.0
    %428 = vmatpush1.msra.mxu0 %v397
    %429 = vmatprep.subr.mxu0 0.0
    %430 = vmatpush1.msra.mxu0 %v398
    %431 = vmatprep.subr.mxu0 0.0
    %432 = vmatpush1.msra.mxu0 %v399
    %433 = vmatprep.subr.mxu0 0.0
    %434 = vmatpush1.msra.mxu0 %v400
    %435 = vmatprep.subr.mxu0 0.0
    %436 = vmatpush1.msra.mxu0 %v401
    %437 = vmatprep.subr.mxu0 0.0
    %438 = vmatpush1.msra.mxu0 %v402
    %439 = vmatprep.subr.mxu0 0.0
    %440 = vmatpush1.msra.mxu0 %v403
    %441 = vmatprep.subr.mxu0 0.0
    %442 = vmatpush1.msra.mxu0 %v404
    %443 = vmatprep.subr.mxu0 0.0
    %444 = vmatpush1.msra.mxu0 0.0
    %445 = vmatprep.subr.mxu0 0.0
    %446 = vmatpush1.msra.mxu0 0.0
    %447 = vmatprep.subr.mxu0 0.0
    %448 = vmatpush1.msra.mxu0 0.0
    %449 = vmatprep.subr.mxu0 0.0
    %450 = vmatpush1.msra.mxu0 0.0
    %451 = vmatprep.subr.mxu0 0.0
    %452 = vmatpush1.msra.mxu0 0.0
    %453 = vmatprep.subr.mxu0 0.0
    %454 = vmatpush1.msra.mxu0 0.0
    %455 = vmatprep.subr.mxu0 0.0
    %456 = vmatpush1.msra.mxu0 0.0
    %457 = vmatprep.subr.mxu0 0.0
    %458 = vmatpush1.msra.mxu0 0.0
    %459 = vmatprep.subr.mxu0 0.0
    %460 = vmatpush1.msra.mxu0 0.0
    %461 = vmatprep.subr.mxu0 0.0
    %462 = vmatpush1.msra.mxu0 0.0
    %463 = vmatprep.subr.mxu0 0.0
    %464 = vmatpush1.msra.mxu0 0.0
    %465 = vmatprep.subr.mxu0 0.0
    %466 = vmatpush1.msra.mxu0 0.0
    %467 = vmatprep.subr.mxu0 0.0
    %468 = vmatpush1.msra.mxu0 0.0
    %469 = vmatprep.subr.mxu0 0.0
    %470 = vmatpush1.msra.mxu0 0.0
    %471 = vmatprep.subr.mxu0 0.0
    %472 = vmatpush1.msra.mxu0 0.0
    %473 = vmatprep.subr.mxu0 0.0
    %474 = vmatpush1.msra.mxu0 0.0
    %475 = vmatprep.mubr.f32.mxu0 0.0
    %476 = vmatmul.mubr.f32.gmra.mrb[0].mxu0 %v388
    %v477 = vpop.f32.mrb[0].mxu0
    %v478 = vadd.f32 %v409, %v477
    %v479 = vpop.f32.mrb[0].mxu0
    %480 = vdwg.mxu0
    %vm481 = vcmp.gt.f32.partialorder %v378, 0.0
    %v482 = vrcp.pop %v478
    %v483 = vmul.f32 %v388, %v482
    %v484 = vsel %vm481, 1, 0
    %v485 = vlaneseq
    %v486 = vshrl.u32 %v485, 7
    %v487 = vsub.s32 0, %v486
    %v488 = vrot.slane %v484, %v487
    %vm489 = vcmp.eq.s32.totalorder %v488, 1
    %v490 = vsel %vm489, %v374, %v483
    %491 = vst [vmem:[#allocation11] sm:$0xff] %v490
    // Predicated region
    $region66: #{tpu_custom_call.1} parent=1 // pred_check
      _
    $region67: #{tpu_custom_call.1} parent=1 // pred_check_branch
      %493 = sbr.rel (0) target = $region69
    $region68: #{tpu_custom_call.1} parent=1 // pred_region
      %s495 = ssub.s32 128, 128
      %496 = vsyncadd [#allocation4], %s495
      %s498 = sshll.u32 [#allocation11], 4
      %s499 = int_to_ptr.vmem [resolvable:$true] %s498
      %501 = dma.vmem_to_hbm [thread:$0]  %s499, 128, %s11, [#allocation4]
    $region69: #{tpu_custom_call.1} parent=1 // pred_fallthru
      _
    // Predicated region
    $region70: #{tpu_custom_call.1} parent=1 // pred_check
      _
    $region71: #{tpu_custom_call.1} parent=1 // pred_check_branch
      %503 = sbr.rel (0) target = $region73
    $region72: #{tpu_custom_call.1} parent=1 // pred_region
      %504 = dma.done [#allocation4], 128
    $region73: #{tpu_custom_call.1} parent=1 // pred_fallthru
      _
    %505 = vsyncpa [#allocation3], 1
    %506 = vsyncpa [#allocation6], 1
    %507 = vsyncpa [#allocation9], 1
    %508 = vsyncpa [#allocation4], 1

</llo_original>
